<compile_context>
chip_gen: v5e
topology: v5e:2x2
jax: 0.10.0
libtpu: 0.0.40
codegen_flags: <defaults>
</compile_context>

<pallas_src>
import math
import functools

import jax
import jax.numpy as jnp
from jax.experimental import pallas as pl
from jax.experimental.pallas import tpu as pltpu


def _mha_head_kernel(q_ref, k_ref, v_ref, mask_ref,
                     wq_ref, bq_ref, wk_ref, bk_ref, wv_ref, bv_ref,
                     wo_ref, bo_ref,
                     out_ref, acc_ref, *, scale):
    """Grid = (batch, q_tile, head); one head's output-projection contribution per step."""
    head = pl.program_id(2)
    n_heads = pl.num_programs(2)

    @pl.when(head == 0)
    def _():
        acc_ref[...] = jnp.zeros_like(acc_ref)

    q = q_ref[0]          # (tq, D)
    k = k_ref[0]          # (S,  D)
    v = v_ref[0]          # (S,  D)

    # Per-head projections. Head slicing happened in the BlockSpec, so these are
    # plain lane-dense 2-D matmuls (contraction = D), no in-kernel reshape/transpose.
    qh = (jnp.dot(q, wq_ref[0], preferred_element_type=jnp.float32) + bq_ref[0]) * scale
    kh = jnp.dot(k, wk_ref[0], preferred_element_type=jnp.float32) + bk_ref[0]
    vh = jnp.dot(v, wv_ref[0], preferred_element_type=jnp.float32) + bv_ref[0]

    # scores = qh @ kh^T via dot_general contracting last dims (no XLU transpose).
    scores = jax.lax.dot_general(qh, kh, (((1,), (1,)), ((), ())),
                                 preferred_element_type=jnp.float32)      # (tq, S)
    scores = jnp.where(mask_ref[0] != 0, scores, -1e9)

    m = jnp.max(scores, axis=-1, keepdims=True)
    p = jnp.exp(scores - m)
    l = jnp.sum(p, axis=-1, keepdims=True)
    inv_l = pl.reciprocal(l, approx=True)          # divide -> EUP slot

    # Un-normalized context, normalized on the narrow (tq, d_k) result.
    ctx = jnp.dot(p, vh, preferred_element_type=jnp.float32) * inv_l      # (tq, d_k)

    # This head's share of the output projection: ctx_h @ Wo_h  (accumulated over heads).
    acc_ref[...] += jnp.dot(ctx, wo_ref[0], preferred_element_type=jnp.float32)

    @pl.when(head == n_heads - 1)
    def _():
        out_ref[0] = acc_ref[...] + bo_ref[...]

    # TODO(synk): attention-score dropout omitted (equivalent to dropout=0.0 / eval mode).


def multi_head_attention(q, k, v, mask, params, h):
    B, S, D = q.shape
    assert D % h == 0, "d_model must be divisible by h"
    d_k = D // h
    wq, bq, wk, bk, wv, bv, wo, bo = params

    # ---- one-time glue in plain JAX (outside the kernel) ----
    # nn.Linear weight is (out, in); y = x @ W^T + b. Split the *output* dim per head
    # so each grid step DMAs only its (D, d_k) slice.
    def split_heads_out(w):                         # (D_out, D_in) -> (h, D_in, d_k)
        return jnp.transpose(w.T.reshape(D, h, d_k), (1, 0, 2))

    wq3, wk3, wv3 = split_heads_out(wq), split_heads_out(wk), split_heads_out(wv)
    wo3 = wo.T.reshape(h, d_k, D)                   # per-head rows of W_o^T
    bq3 = bq.reshape(h, 1, d_k)
    bk3 = bk.reshape(h, 1, d_k)
    bv3 = bv.reshape(h, 1, d_k)
    bo2 = bo.reshape(1, D)

    # int8 "keep" mask: 4x less HBM traffic than a dense f32 (B,S,S) mask.
    mask_i8 = (mask != 0).astype(jnp.int8)

    # Query tiling (full K/V resident per batch element).
    tq = S if S <= 128 else 128
    assert S % tq == 0, "S must be divisible by the query tile"
    n_q = S // tq

    kernel = functools.partial(_mha_head_kernel, scale=1.0 / math.sqrt(d_k))

    grid = (B, n_q, h)   # head axis = reduction over the output -> last, "arbitrary"

    in_specs = [
        pl.BlockSpec((1, tq, D),  lambda b, qi, hh: (b, qi, 0)),   # q tile
        pl.BlockSpec((1, S, D),   lambda b, qi, hh: (b, 0, 0)),    # k (full seq, resident)
        pl.BlockSpec((1, S, D),   lambda b, qi, hh: (b, 0, 0)),    # v (full seq, resident)
        pl.BlockSpec((1, tq, S),  lambda b, qi, hh: (b, qi, 0)),   # mask tile (int8)
        pl.BlockSpec((1, D, d_k), lambda b, qi, hh: (hh, 0, 0)),   # w_q head slice
        pl.BlockSpec((1, 1, d_k), lambda b, qi, hh: (hh, 0, 0)),   # b_q head slice
        pl.BlockSpec((1, D, d_k), lambda b, qi, hh: (hh, 0, 0)),   # w_k head slice
        pl.BlockSpec((1, 1, d_k), lambda b, qi, hh: (hh, 0, 0)),   # b_k head slice
        pl.BlockSpec((1, D, d_k), lambda b, qi, hh: (hh, 0, 0)),   # w_v head slice
        pl.BlockSpec((1, 1, d_k), lambda b, qi, hh: (hh, 0, 0)),   # b_v head slice
        pl.BlockSpec((1, d_k, D), lambda b, qi, hh: (hh, 0, 0)),   # w_o head slice
        pl.BlockSpec((1, D),      lambda b, qi, hh: (0, 0)),       # b_o
    ]

    return pl.pallas_call(
        kernel,
        out_shape=jax.ShapeDtypeStruct((B, S, D), jnp.float32),
        grid=grid,
        in_specs=in_specs,
        out_specs=pl.BlockSpec((1, tq, D), lambda b, qi, hh: (b, qi, 0)),
        scratch_shapes=[pltpu.VMEM((tq, D), jnp.float32)],         # output-proj accumulator
        compiler_params=pltpu.CompilerParams(
            dimension_semantics=("parallel", "parallel", "arbitrary"),
            vmem_limit_bytes=32 * 1024 * 1024),
    )(q, k, v, mask_i8, wq3, bq3, wk3, bk3, wv3, bv3, wo3, bo2)


def _reference(q, k, v, mask, params, h):
    """Pure-JAX replica of the PyTorch forward (dropout = identity)."""
    B, S, D = q.shape
    d_k = D // h
    wq, bq, wk, bk, wv, bv, wo, bo = params
    Q = q @ wq.T + bq
    K = k @ wk.T + bk
    V = v @ wv.T + bv
    Q = Q.reshape(B, S, h, d_k).transpose(0, 2, 1, 3)
    K = K.reshape(B, S, h, d_k).transpose(0, 2, 1, 3)
    V = V.reshape(B, S, h, d_k).transpose(0, 2, 1, 3)
    scores = jnp.einsum('bhqd,bhkd->bhqk', Q, K) / math.sqrt(d_k)
    scores = jnp.where(mask[:, None, :, :] == 0, -1e9, scores)
    p = jax.nn.softmax(scores, axis=-1)
    x = jnp.einsum('bhqk,bhkd->bhqd', p, V)
    x = x.transpose(0, 2, 1, 3).reshape(B, S, D)
    return x @ wo.T + bo


def _init_linear(key, d_out, d_in):
    # Deterministic nn.Linear-style init: U(-1/sqrt(fan_in), 1/sqrt(fan_in)).
    kw, kb = jax.random.split(key)
    bound = 1.0 / math.sqrt(d_in)
    w = jax.random.uniform(kw, (d_out, d_in), jnp.float32, -bound, bound)
    b = jax.random.uniform(kb, (d_out,), jnp.float32, -bound, bound)
    return w, b


if __name__ == "__main__":
    B, S, D, H = 2, 8, 32, 4     # batch, seq, d_model, heads  (dropout = 0.0)

    root = jax.random.PRNGKey(0)
    kq, kk, kv, kwq, kwk, kwv, kwo = jax.random.split(root, 7)

    q = jax.random.normal(kq, (B, S, D), jnp.float32)
    k = jax.random.normal(kk, (B, S, D), jnp.float32)
    v = jax.random.normal(kv, (B, S, D), jnp.float32)

    # Causal mask (1 = attend, 0 = masked), broadcast over batch.
    mask = jnp.broadcast_to(jnp.tril(jnp.ones((S, S), jnp.float32)), (B, S, S))

    wq, bq = _init_linear(kwq, D, D)
    wk, bk = _init_linear(kwk, D, D)
    wv, bv = _init_linear(kwv, D, D)
    wo, bo = _init_linear(kwo, D, D)
    params = (wq, bq, wk, bk, wv, bv, wo, bo)

    out = multi_head_attention(q, k, v, mask, params, H)
    out = jax.block_until_ready(out)

    ref = _reference(q, k, v, mask, params, H)
    assert out.shape == (B, S, D)
    # Tolerance accounts for the EUP approximate reciprocal in the softmax epilogue.
    assert jnp.allclose(out, ref, atol=5e-3, rtol=5e-3), "mismatch vs reference"

    print("KERNEL_OK")
</pallas_src>

<mosaic_0001>
module attributes {stable_mosaic.version = 11 : i64} {
  func.func @_mha_head_kernel(%arg0: i32, %arg1: i32, %arg2: i32, %arg3: memref<1x8x32xf32, #tpu.memory_space<vmem>>, %arg4: memref<1x8x32xf32, #tpu.memory_space<vmem>>, %arg5: memref<1x8x32xf32, #tpu.memory_space<vmem>>, %arg6: memref<1x8x8xi8, #tpu.memory_space<vmem>>, %arg7: memref<1x32x8xf32, #tpu.memory_space<vmem>>, %arg8: memref<1x1x8xf32, #tpu.memory_space<vmem>>, %arg9: memref<1x32x8xf32, #tpu.memory_space<vmem>>, %arg10: memref<1x1x8xf32, #tpu.memory_space<vmem>>, %arg11: memref<1x32x8xf32, #tpu.memory_space<vmem>>, %arg12: memref<1x1x8xf32, #tpu.memory_space<vmem>>, %arg13: memref<1x8x32xf32, #tpu.memory_space<vmem>>, %arg14: memref<1x32xf32, #tpu.memory_space<vmem>>, %arg15: memref<1x8x32xf32, #tpu.memory_space<vmem>>, %arg16: memref<8x32xf32, #tpu.memory_space<vmem>>) attributes {dimension_semantics = [#tpu.dimension_semantics<parallel>, #tpu.dimension_semantics<parallel>, #tpu.dimension_semantics<arbitrary>], iteration_bounds = array<i64: 2, 1, 4>, scalar_prefetch = 0 : i64, scratch_operands = 1 : i64, tpu.core_type = #tpu.core_type<tc>, window_params = [{transform_indices = @transform_0, window_bounds = array<i64: 1, 8, 32>}, {transform_indices = @transform_1, window_bounds = array<i64: 1, 8, 32>}, {transform_indices = @transform_2, window_bounds = array<i64: 1, 8, 32>}, {transform_indices = @transform_3, window_bounds = array<i64: 1, 8, 8>}, {transform_indices = @transform_4, window_bounds = array<i64: 1, 32, 8>}, {transform_indices = @transform_5, window_bounds = array<i64: 1, 1, 8>}, {transform_indices = @transform_6, window_bounds = array<i64: 1, 32, 8>}, {transform_indices = @transform_7, window_bounds = array<i64: 1, 1, 8>}, {transform_indices = @transform_8, window_bounds = array<i64: 1, 32, 8>}, {transform_indices = @transform_9, window_bounds = array<i64: 1, 1, 8>}, {transform_indices = @transform_10, window_bounds = array<i64: 1, 8, 32>}, {pipeline_mode = #tpu.pipeline_mode<synchronous>, transform_indices = @transform_11, window_bounds = array<i64: 1, 32>}, {transform_indices = @transform_12, window_bounds = array<i64: 1, 8, 32>}]} {
    %c0_i32 = arith.constant 0 : i32
    %0 = arith.cmpi eq, %arg2, %c0_i32 : i32
    %1 = arith.extui %0 : i1 to i32
    %c0_i32_0 = arith.constant 0 : i32
    %2 = arith.cmpi ne, %1, %c0_i32_0 : i32
    scf.if %2 {
      %cst_47 = arith.constant 0.000000e+00 : f32
      %59 = vector.broadcast %cst_47 : f32 to vector<8x32xf32>
      %c0_48 = arith.constant 0 : index
      %c0_49 = arith.constant 0 : index
      %60 = vector.load %arg16[%c0_48, %c0_49] : memref<8x32xf32, #tpu.memory_space<vmem>>, vector<8x32xf32>
      tpu.vector_store %arg16[%c0_48, %c0_49], %59 {strides = array<i32>} : memref<8x32xf32, #tpu.memory_space<vmem>>, vector<8x32xf32>,
    } else {
    }
    %c0 = arith.constant 0 : index
    %c0_1 = arith.constant 0 : index
    %c0_2 = arith.constant 0 : index
    %3 = vector.load %arg3[%c0, %c0_1, %c0_2] : memref<1x8x32xf32, #tpu.memory_space<vmem>>, vector<1x8x32xf32>
    %4 = vector.shape_cast %3 : vector<1x8x32xf32> to vector<8x32xf32>
    %c0_3 = arith.constant 0 : index
    %c0_4 = arith.constant 0 : index
    %c0_5 = arith.constant 0 : index
    %5 = vector.load %arg4[%c0_3, %c0_4, %c0_5] : memref<1x8x32xf32, #tpu.memory_space<vmem>>, vector<1x8x32xf32>
    %6 = vector.shape_cast %5 : vector<1x8x32xf32> to vector<8x32xf32>
    %c0_6 = arith.constant 0 : index
    %c0_7 = arith.constant 0 : index
    %c0_8 = arith.constant 0 : index
    %7 = vector.load %arg5[%c0_6, %c0_7, %c0_8] : memref<1x8x32xf32, #tpu.memory_space<vmem>>, vector<1x8x32xf32>
    %8 = vector.shape_cast %7 : vector<1x8x32xf32> to vector<8x32xf32>
    %c0_9 = arith.constant 0 : index
    %c0_10 = arith.constant 0 : index
    %c0_11 = arith.constant 0 : index
    %9 = vector.load %arg7[%c0_9, %c0_10, %c0_11] : memref<1x32x8xf32, #tpu.memory_space<vmem>>, vector<1x32x8xf32>
    %10 = vector.shape_cast %9 : vector<1x32x8xf32> to vector<32x8xf32>
    %cst = arith.constant dense<0.000000e+00> : vector<8x8xf32>
    %11 = tpu.matmul %4, %10, %cst {dimension_numbers = #tpu.dot_dimension_numbers<[1], [0], [0], [1], [0, 0, 1, 1], [], []>} : vector<8x32xf32>, vector<32x8xf32>, vector<8x8xf32> -> vector<8x8xf32>
    %c0_12 = arith.constant 0 : index
    %c0_13 = arith.constant 0 : index
    %c0_14 = arith.constant 0 : index
    %12 = vector.load %arg8[%c0_12, %c0_13, %c0_14] : memref<1x1x8xf32, #tpu.memory_space<vmem>>, vector<1x1x8xf32>
    %13 = vector.shape_cast %12 : vector<1x1x8xf32> to vector<1x8xf32>
    %14 = vector.broadcast %13 : vector<1x8xf32> to vector<8x8xf32>
    %15 = arith.addf %11, %14 : vector<8x8xf32>
    %cst_15 = arith.constant 0.353553385 : f32
    %16 = vector.broadcast %cst_15 : f32 to vector<8x8xf32>
    %17 = arith.mulf %15, %16 : vector<8x8xf32>
    %c0_16 = arith.constant 0 : index
    %c0_17 = arith.constant 0 : index
    %c0_18 = arith.constant 0 : index
    %18 = vector.load %arg9[%c0_16, %c0_17, %c0_18] : memref<1x32x8xf32, #tpu.memory_space<vmem>>, vector<1x32x8xf32>
    %19 = vector.shape_cast %18 : vector<1x32x8xf32> to vector<32x8xf32>
    %cst_19 = arith.constant dense<0.000000e+00> : vector<8x8xf32>
    %20 = tpu.matmul %6, %19, %cst_19 {dimension_numbers = #tpu.dot_dimension_numbers<[1], [0], [0], [1], [0, 0, 1, 1], [], []>} : vector<8x32xf32>, vector<32x8xf32>, vector<8x8xf32> -> vector<8x8xf32>
    %c0_20 = arith.constant 0 : index
    %c0_21 = arith.constant 0 : index
    %c0_22 = arith.constant 0 : index
    %21 = vector.load %arg10[%c0_20, %c0_21, %c0_22] : memref<1x1x8xf32, #tpu.memory_space<vmem>>, vector<1x1x8xf32>
    %22 = vector.shape_cast %21 : vector<1x1x8xf32> to vector<1x8xf32>
    %23 = vector.broadcast %22 : vector<1x8xf32> to vector<8x8xf32>
    %24 = arith.addf %20, %23 : vector<8x8xf32>
    %c0_23 = arith.constant 0 : index
    %c0_24 = arith.constant 0 : index
    %c0_25 = arith.constant 0 : index
    %25 = vector.load %arg11[%c0_23, %c0_24, %c0_25] : memref<1x32x8xf32, #tpu.memory_space<vmem>>, vector<1x32x8xf32>
    %26 = vector.shape_cast %25 : vector<1x32x8xf32> to vector<32x8xf32>
    %cst_26 = arith.constant dense<0.000000e+00> : vector<8x8xf32>
    %27 = tpu.matmul %8, %26, %cst_26 {dimension_numbers = #tpu.dot_dimension_numbers<[1], [0], [0], [1], [0, 0, 1, 1], [], []>} : vector<8x32xf32>, vector<32x8xf32>, vector<8x8xf32> -> vector<8x8xf32>
    %c0_27 = arith.constant 0 : index
    %c0_28 = arith.constant 0 : index
    %c0_29 = arith.constant 0 : index
    %28 = vector.load %arg12[%c0_27, %c0_28, %c0_29] : memref<1x1x8xf32, #tpu.memory_space<vmem>>, vector<1x1x8xf32>
    %29 = vector.shape_cast %28 : vector<1x1x8xf32> to vector<1x8xf32>
    %30 = vector.broadcast %29 : vector<1x8xf32> to vector<8x8xf32>
    %31 = arith.addf %27, %30 : vector<8x8xf32>
    %cst_30 = arith.constant dense<0.000000e+00> : vector<8x8xf32>
    %32 = tpu.matmul %17, %24, %cst_30 {dimension_numbers = #tpu.dot_dimension_numbers<[1], [1], [0], [0], [0, 0, 1, 0], [], []>} : vector<8x8xf32>, vector<8x8xf32>, vector<8x8xf32> -> vector<8x8xf32>
    %c0_31 = arith.constant 0 : index
    %c0_32 = arith.constant 0 : index
    %c0_33 = arith.constant 0 : index
    %33 = vector.load %arg6[%c0_31, %c0_32, %c0_33] : memref<1x8x8xi8, #tpu.memory_space<vmem>>, vector<1x8x8xi8>
    %34 = vector.shape_cast %33 : vector<1x8x8xi8> to vector<8x8xi8>
    %c0_i8 = arith.constant 0 : i8
    %35 = vector.broadcast %c0_i8 : i8 to vector<8x8xi8>
    %36 = arith.cmpi ne, %34, %35 : vector<8x8xi8>
    %cst_34 = arith.constant -1.000000e+09 : f32
    %37 = vector.broadcast %cst_34 : f32 to vector<8x8xf32>
    %38 = arith.select %36, %32, %37 : vector<8x8xi1>, vector<8x8xf32>
    %cst_35 = arith.constant dense<0xFF800000> : vector<8xf32>
    %39 = vector.multi_reduction <maximumf>, %38, %cst_35 [1] : vector<8x8xf32> to vector<8xf32>
    %40 = vector.shape_cast %39 : vector<8xf32> to vector<8x1xf32>
    %41 = vector.broadcast %40 : vector<8x1xf32> to vector<8x8xf32>
    %42 = arith.subf %38, %41 : vector<8x8xf32>
    %43 = math.exp %42 : vector<8x8xf32>
    %cst_36 = arith.constant dense<0.000000e+00> : vector<8xf32>
    %44 = vector.multi_reduction <add>, %43, %cst_36 [1] : vector<8x8xf32> to vector<8xf32>
    %45 = vector.shape_cast %44 : vector<8xf32> to vector<8x1xf32>
    %46 = tpu.reciprocal %45 {approx = true} : vector<8x1xf32> -> vector<8x1xf32>
    %cst_37 = arith.constant dense<0.000000e+00> : vector<8x8xf32>
    %47 = tpu.matmul %43, %31, %cst_37 {dimension_numbers = #tpu.dot_dimension_numbers<[1], [0], [0], [1], [0, 0, 1, 1], [], []>} : vector<8x8xf32>, vector<8x8xf32>, vector<8x8xf32> -> vector<8x8xf32>
    %48 = vector.broadcast %46 : vector<8x1xf32> to vector<8x8xf32>
    %49 = arith.mulf %47, %48 : vector<8x8xf32>
    %c0_38 = arith.constant 0 : index
    %c0_39 = arith.constant 0 : index
    %50 = vector.load %arg16[%c0_38, %c0_39] : memref<8x32xf32, #tpu.memory_space<vmem>>, vector<8x32xf32>
    %c0_40 = arith.constant 0 : index
    %c0_41 = arith.constant 0 : index
    %c0_42 = arith.constant 0 : index
    %51 = vector.load %arg13[%c0_40, %c0_41, %c0_42] : memref<1x8x32xf32, #tpu.memory_space<vmem>>, vector<1x8x32xf32>
    %52 = vector.shape_cast %51 : vector<1x8x32xf32> to vector<8x32xf32>
    %cst_43 = arith.constant dense<0.000000e+00> : vector<8x32xf32>
    %53 = tpu.matmul %49, %52, %cst_43 {dimension_numbers = #tpu.dot_dimension_numbers<[1], [0], [0], [1], [0, 0, 1, 1], [], []>} : vector<8x8xf32>, vector<8x32xf32>, vector<8x32xf32> -> vector<8x32xf32>
    %54 = arith.addf %50, %53 : vector<8x32xf32>
    %c0_44 = arith.constant 0 : index
    %c0_45 = arith.constant 0 : index
    %55 = vector.load %arg16[%c0_44, %c0_45] : memref<8x32xf32, #tpu.memory_space<vmem>>, vector<8x32xf32>
    tpu.vector_store %arg16[%c0_44, %c0_45], %54 {strides = array<i32>} : memref<8x32xf32, #tpu.memory_space<vmem>>, vector<8x32xf32>,
    %c3_i32 = arith.constant 3 : i32
    %56 = arith.cmpi eq, %arg2, %c3_i32 : i32
    %57 = arith.extui %56 : i1 to i32
    %c0_i32_46 = arith.constant 0 : i32
    %58 = arith.cmpi ne, %57, %c0_i32_46 : i32
    scf.if %58 {
      %c0_47 = arith.constant 0 : index
      %c0_48 = arith.constant 0 : index
      %59 = vector.load %arg16[%c0_47, %c0_48] : memref<8x32xf32, #tpu.memory_space<vmem>>, vector<8x32xf32>
      %c0_49 = arith.constant 0 : index
      %c0_50 = arith.constant 0 : index
      %60 = vector.load %arg14[%c0_49, %c0_50] : memref<1x32xf32, #tpu.memory_space<vmem>>, vector<1x32xf32>
      %61 = vector.broadcast %60 : vector<1x32xf32> to vector<8x32xf32>
      %62 = arith.addf %59, %61 : vector<8x32xf32>
      %c0_51 = arith.constant 0 : index
      %c0_52 = arith.constant 0 : index
      %c0_53 = arith.constant 0 : index
      %63 = vector.load %arg15[%c0_51, %c0_52, %c0_53] : memref<1x8x32xf32, #tpu.memory_space<vmem>>, vector<1x8x32xf32>
      %64 = vector.shape_cast %63 : vector<1x8x32xf32> to vector<8x32xf32>
      %65 = vector.shape_cast %62 : vector<8x32xf32> to vector<1x8x32xf32>
      tpu.vector_store %arg15[%c0_51, %c0_52, %c0_53], %65 {strides = array<i32>} : memref<1x8x32xf32, #tpu.memory_space<vmem>>, vector<1x8x32xf32>,
    } else {
    }
    return
  }
  func.func @transform_0(%arg0: i32, %arg1: i32, %arg2: i32) -> (i32, i32, i32) {
    %c0_i32 = arith.constant 0 : i32
    %c0_i32_0 = arith.constant 0 : i32
    return %arg0, %arg1, %c0_i32 : i32, i32, i32
  }
  func.func @transform_1(%arg0: i32, %arg1: i32, %arg2: i32) -> (i32, i32, i32) {
    %c0_i32 = arith.constant 0 : i32
    %c0_i32_0 = arith.constant 0 : i32
    %c0_i32_1 = arith.constant 0 : i32
    return %arg0, %c0_i32, %c0_i32_0 : i32, i32, i32
  }
  func.func @transform_2(%arg0: i32, %arg1: i32, %arg2: i32) -> (i32, i32, i32) {
    %c0_i32 = arith.constant 0 : i32
    %c0_i32_0 = arith.constant 0 : i32
    %c0_i32_1 = arith.constant 0 : i32
    return %arg0, %c0_i32, %c0_i32_0 : i32, i32, i32
  }
  func.func @transform_3(%arg0: i32, %arg1: i32, %arg2: i32) -> (i32, i32, i32) {
    %c0_i32 = arith.constant 0 : i32
    %c0_i32_0 = arith.constant 0 : i32
    return %arg0, %arg1, %c0_i32 : i32, i32, i32
  }
  func.func @transform_4(%arg0: i32, %arg1: i32, %arg2: i32) -> (i32, i32, i32) {
    %c0_i32 = arith.constant 0 : i32
    %c0_i32_0 = arith.constant 0 : i32
    %c0_i32_1 = arith.constant 0 : i32
    return %arg2, %c0_i32, %c0_i32_0 : i32, i32, i32
  }
  func.func @transform_5(%arg0: i32, %arg1: i32, %arg2: i32) -> (i32, i32, i32) {
    %c0_i32 = arith.constant 0 : i32
    %c0_i32_0 = arith.constant 0 : i32
    %c0_i32_1 = arith.constant 0 : i32
    return %arg2, %c0_i32, %c0_i32_0 : i32, i32, i32
  }
  func.func @transform_6(%arg0: i32, %arg1: i32, %arg2: i32) -> (i32, i32, i32) {
    %c0_i32 = arith.constant 0 : i32
    %c0_i32_0 = arith.constant 0 : i32
    %c0_i32_1 = arith.constant 0 : i32
    return %arg2, %c0_i32, %c0_i32_0 : i32, i32, i32
  }
  func.func @transform_7(%arg0: i32, %arg1: i32, %arg2: i32) -> (i32, i32, i32) {
    %c0_i32 = arith.constant 0 : i32
    %c0_i32_0 = arith.constant 0 : i32
    %c0_i32_1 = arith.constant 0 : i32
    return %arg2, %c0_i32, %c0_i32_0 : i32, i32, i32
  }
  func.func @transform_8(%arg0: i32, %arg1: i32, %arg2: i32) -> (i32, i32, i32) {
    %c0_i32 = arith.constant 0 : i32
    %c0_i32_0 = arith.constant 0 : i32
    %c0_i32_1 = arith.constant 0 : i32
    return %arg2, %c0_i32, %c0_i32_0 : i32, i32, i32
  }
  func.func @transform_9(%arg0: i32, %arg1: i32, %arg2: i32) -> (i32, i32, i32) {
    %c0_i32 = arith.constant 0 : i32
    %c0_i32_0 = arith.constant 0 : i32
    %c0_i32_1 = arith.constant 0 : i32
    return %arg2, %c0_i32, %c0_i32_0 : i32, i32, i32
  }
  func.func @transform_10(%arg0: i32, %arg1: i32, %arg2: i32) -> (i32, i32, i32) {
    %c0_i32 = arith.constant 0 : i32
    %c0_i32_0 = arith.constant 0 : i32
    %c0_i32_1 = arith.constant 0 : i32
    return %arg2, %c0_i32, %c0_i32_0 : i32, i32, i32
  }
  func.func @transform_11(%arg0: i32, %arg1: i32, %arg2: i32) -> (i32, i32) {
    %c0_i32 = arith.constant 0 : i32
    %c0_i32_0 = arith.constant 0 : i32
    %c0_i32_1 = arith.constant 0 : i32
    return %c0_i32, %c0_i32_0 : i32, i32
  }
  func.func @transform_12(%arg0: i32, %arg1: i32, %arg2: i32) -> (i32, i32, i32) {
    %c0_i32 = arith.constant 0 : i32
    %c0_i32_0 = arith.constant 0 : i32
    return %arg0, %arg1, %c0_i32 : i32, i32, i32
  }
}

</mosaic_0001>

<llo_original>
// kernel: tpu_custom_call.1
$region0: #{tpu_custom_call.1}
  #allocation0 [shape = 'u32[]', space=smem, size = 0x4, offset = 0x4, fixed_abs, tag = 'smem constant byte address 0x4 - core index']
  #allocation1 [shape = 'u32[72,128]{1,0:T(1,128)}', space=vmem, size = 0x9000, scoped, tag = 'internal scratch']
  #allocation2 [shape = 'f32[8,32]{1,0:T(8,128)}', space=vmem, size = 0x1000, scoped, tag = 'scratch operand']
  %s0 = inlined_call_operand.vmem [shape: f32[2,8,32], index: 0, kind: input, shape index: {}]
  %s1 = inlined_call_operand.vmem [shape: f32[2,8,32], index: 1, kind: input, shape index: {}]
  %s2 = inlined_call_operand.vmem [shape: f32[2,8,32], index: 2, kind: input, shape index: {}]
  %s3 = inlined_call_operand.vmem [shape: s8[2,8,8], index: 3, kind: input, shape index: {}]
  %s4 = inlined_call_operand.vmem [shape: f32[4,32,8], index: 4, kind: input, shape index: {}]
  %s5 = inlined_call_operand.vmem [shape: f32[4,1,8], index: 5, kind: input, shape index: {}]
  %s6 = inlined_call_operand.vmem [shape: f32[4,32,8], index: 6, kind: input, shape index: {}]
  %s7 = inlined_call_operand.vmem [shape: f32[4,1,8], index: 7, kind: input, shape index: {}]
  %s8 = inlined_call_operand.vmem [shape: f32[4,32,8], index: 8, kind: input, shape index: {}]
  %s9 = inlined_call_operand.vmem [shape: f32[4,1,8], index: 9, kind: input, shape index: {}]
  %s10 = inlined_call_operand.vmem [shape: f32[4,8,32], index: 10, kind: input, shape index: {}]
  %s11 = inlined_call_operand.vmem [shape: f32[1,32], index: 11, kind: input, shape index: {}]
  %s12 = inlined_call_operand.hbm [shape: f32[2,8,32], index: 12, kind: output, shape index: {}]
  %s13 = sld [smem:[#allocation0]]
  $region89: #{tpu_custom_call.1} parent=0
    _
  %s15 = ssub.s32 1, %s13
  %s16 = scalar_select 0, %s15, %s13
  $region1: #{tpu_custom_call.1} parent=0
    #allocation3 [shape = 'u8[8192]{0}', space=vmem, size = 0x2000, scoped, tag = 'output window, operand 0']
    #allocation4 [shape = 's32[2]{0}', space=sflag, size = 0x8, scoped, tag = 'scoped memory for tpu_custom_call.1']
    %17 = vsyncpa [#allocation4], 0
    %s18 = scalar_lea.sflag [#allocation4], 1
    %19 = vsyncpa %s18, 0
    loop: start=0, step=1, limit=10
    $region2: #{tpu_custom_call.1} parent=1 // loop_pre_header
      _
    $region3: #{tpu_custom_call.1} parent=1 // loop_header
      %s21 = sphi 0, %s25
      %p22 = scmp.ge.s32.totalorder %s21, 10
      %s28 = sphi 0, %s47
      %s29 = sphi 0, %s43
      %s30 = sphi 0, %s39
      %s31 = sphi 0, %s28
      %s32 = sphi 0, %s29
      %s33 = sphi 0, %s30
      %s34 = sphi 0, %s31
      %s35 = sphi 0, %s32
      %s36 = sphi 0, %s33
      %s52 = sphi 0, %s54
      %s55 = sphi 0, %s52
      %s56 = sphi 0, %s55
      %s72 = sphi 0, %s56
      %s78 = sphi 0, %s80
      %s81 = sphi 0, %s78
      %s82 = sphi 0, %s81
      %s98 = sphi 0, %s82
      %s104 = sphi 0, %s106
      %s107 = sphi 0, %s104
      %s108 = sphi 0, %s107
      %s124 = sphi 0, %s108
      %s132 = sphi 0, %s134
      %s135 = sphi 0, %s132
      %s136 = sphi 0, %s135
      %s152 = sphi 0, %s136
      %s158 = sphi 0, %s160
      %s161 = sphi 0, %s158
      %s162 = sphi 0, %s161
      %s178 = sphi 0, %s162
      %s184 = sphi 0, %s186
      %s187 = sphi 0, %s184
      %s188 = sphi 0, %s187
      %s204 = sphi 0, %s188
      %s210 = sphi 0, %s212
      %s213 = sphi 0, %s210
      %s214 = sphi 0, %s213
      %s230 = sphi 0, %s214
      %s236 = sphi 0, %s238
      %s239 = sphi 0, %s236
      %s240 = sphi 0, %s239
      %s256 = sphi 0, %s240
      %s262 = sphi 0, %s264
      %s265 = sphi 0, %s262
      %s266 = sphi 0, %s265
      %s282 = sphi 0, %s266
      %s288 = sphi 0, %s290
      %s291 = sphi 0, %s288
      %s292 = sphi 0, %s291
      %s308 = sphi 0, %s292
      %s314 = sphi 0, %s316
      %s317 = sphi 0, %s314
      %s318 = sphi 0, %s317
      %s334 = sphi 0, %s318
      %s338 = sphi 0, %s338
      %s340 = sphi 0, %s338
      %s341 = sphi 0, %s340
      %s355 = sphi 0, %s341
      %s363 = sphi 0, %s365
      %s366 = sphi 0, %s363
      %s367 = sphi 0, %s366
      %s383 = sphi 0, %s367
    $region4: #{tpu_custom_call.1} parent=1 // loop_header_branch
      %24 = sbr.rel (%p22) target = $region8
    $region5: #{tpu_custom_call.1} parent=1 // loop_body
      %s26 = ssub.s32 %s21, 1
      %s27 = ssub.s32 %s21, 2
      %s37 = sadd.s32 1, %s30
      %p38 = scmp.ge.s32.totalorder %s37, 4
      %s39 = scalar_select %p38, 0, %s37
      %s40 = sadd.s32 1, %s29
      %s41 = scalar_select %p38, %s40, %s29
      %p42 = scmp.ge.s32.totalorder %s41, 1
      %s43 = scalar_select %p42, 0, %s41
      %s44 = sadd.s32 1, %s28
      %s45 = scalar_select %p42, %s44, %s28
      %p46 = scmp.ge.s32.totalorder %s45, 2
      %s47 = scalar_select %p46, 0, %s45
      %s48 = ssub.s32 %s28, %s47
      %s49 = ssub.s32 %s29, %s43
      %s50 = sor.u32 %s48, %s49
      %p51 = scmp.eq.s32.totalorder %s50, 0
      %s53 = sadd.s32 %s52, 1
      %s54 = scalar_select %p51, %s52, %s53
      %p57 = pneg %p51
      %p58 = scmp.eq.s32.totalorder %s21, 7
      %p59 = por %p57, %p58
      %p60 = scmp.ne.s32.totalorder %s52, %s55
      %p61 = scmp.eq.s32.totalorder %s21, 0
      %p62 = por %p60, %p61
      %p63 = scmp.ne.s32.totalorder %s52, %s55
      %p64 = scmp.eq.s32.totalorder %s26, 7
      %p65 = por %p63, %p64
      %p66 = scmp.ne.s32.totalorder %s55, %s56
      %p67 = scmp.eq.s32.totalorder %s26, 0
      %p68 = por %p66, %p67
      %p69 = scmp.ne.s32.totalorder %s55, %s56
      %p70 = scmp.eq.s32.totalorder %s27, 7
      %p71 = por %p69, %p70
      %p73 = scmp.ne.s32.totalorder %s56, %s72
      %p74 = scmp.eq.s32.totalorder %s27, 0
      %p75 = por %p73, %p74
      %s76 = ssub.s32 %s28, %s47
      %p77 = scmp.eq.s32.totalorder %s76, 0
      %s79 = sadd.s32 %s78, 1
      %s80 = scalar_select %p77, %s78, %s79
      %p83 = pneg %p77
      %p84 = scmp.eq.s32.totalorder %s21, 7
      %p85 = por %p83, %p84
      %p86 = scmp.ne.s32.totalorder %s78, %s81
      %p87 = scmp.eq.s32.totalorder %s21, 0
      %p88 = por %p86, %p87
      %p89 = scmp.ne.s32.totalorder %s78, %s81
      %p90 = scmp.eq.s32.totalorder %s26, 7
      %p91 = por %p89, %p90
      %p92 = scmp.ne.s32.totalorder %s81, %s82
      %p93 = scmp.eq.s32.totalorder %s26, 0
      %p94 = por %p92, %p93
      %p95 = scmp.ne.s32.totalorder %s81, %s82
      %p96 = scmp.eq.s32.totalorder %s27, 7
      %p97 = por %p95, %p96
      %p99 = scmp.ne.s32.totalorder %s82, %s98
      %p100 = scmp.eq.s32.totalorder %s27, 0
      %p101 = por %p99, %p100
      %s102 = ssub.s32 %s28, %s47
      %p103 = scmp.eq.s32.totalorder %s102, 0
      %s105 = sadd.s32 %s104, 1
      %s106 = scalar_select %p103, %s104, %s105
      %p109 = pneg %p103
      %p110 = scmp.eq.s32.totalorder %s21, 7
      %p111 = por %p109, %p110
      %p112 = scmp.ne.s32.totalorder %s104, %s107
      %p113 = scmp.eq.s32.totalorder %s21, 0
      %p114 = por %p112, %p113
      %p115 = scmp.ne.s32.totalorder %s104, %s107
      %p116 = scmp.eq.s32.totalorder %s26, 7
      %p117 = por %p115, %p116
      %p118 = scmp.ne.s32.totalorder %s107, %s108
      %p119 = scmp.eq.s32.totalorder %s26, 0
      %p120 = por %p118, %p119
      %p121 = scmp.ne.s32.totalorder %s107, %s108
      %p122 = scmp.eq.s32.totalorder %s27, 7
      %p123 = por %p121, %p122
      %p125 = scmp.ne.s32.totalorder %s108, %s124
      %p126 = scmp.eq.s32.totalorder %s27, 0
      %p127 = por %p125, %p126
      %s128 = ssub.s32 %s28, %s47
      %s129 = ssub.s32 %s29, %s43
      %s130 = sor.u32 %s128, %s129
      %p131 = scmp.eq.s32.totalorder %s130, 0
      %s133 = sadd.s32 %s132, 1
      %s134 = scalar_select %p131, %s132, %s133
      %p137 = pneg %p131
      %p138 = scmp.eq.s32.totalorder %s21, 7
      %p139 = por %p137, %p138
      %p140 = scmp.ne.s32.totalorder %s132, %s135
      %p141 = scmp.eq.s32.totalorder %s21, 0
      %p142 = por %p140, %p141
      %p143 = scmp.ne.s32.totalorder %s132, %s135
      %p144 = scmp.eq.s32.totalorder %s26, 7
      %p145 = por %p143, %p144
      %p146 = scmp.ne.s32.totalorder %s135, %s136
      %p147 = scmp.eq.s32.totalorder %s26, 0
      %p148 = por %p146, %p147
      %p149 = scmp.ne.s32.totalorder %s135, %s136
      %p150 = scmp.eq.s32.totalorder %s27, 7
      %p151 = por %p149, %p150
      %p153 = scmp.ne.s32.totalorder %s136, %s152
      %p154 = scmp.eq.s32.totalorder %s27, 0
      %p155 = por %p153, %p154
      %s156 = ssub.s32 %s30, %s39
      %p157 = scmp.eq.s32.totalorder %s156, 0
      %s159 = sadd.s32 %s158, 1
      %s160 = scalar_select %p157, %s158, %s159
      %p163 = pneg %p157
      %p164 = scmp.eq.s32.totalorder %s21, 7
      %p165 = por %p163, %p164
      %p166 = scmp.ne.s32.totalorder %s158, %s161
      %p167 = scmp.eq.s32.totalorder %s21, 0
      %p168 = por %p166, %p167
      %p169 = scmp.ne.s32.totalorder %s158, %s161
      %p170 = scmp.eq.s32.totalorder %s26, 7
      %p171 = por %p169, %p170
      %p172 = scmp.ne.s32.totalorder %s161, %s162
      %p173 = scmp.eq.s32.totalorder %s26, 0
      %p174 = por %p172, %p173
      %p175 = scmp.ne.s32.totalorder %s161, %s162
      %p176 = scmp.eq.s32.totalorder %s27, 7
      %p177 = por %p175, %p176
      %p179 = scmp.ne.s32.totalorder %s162, %s178
      %p180 = scmp.eq.s32.totalorder %s27, 0
      %p181 = por %p179, %p180
      %s182 = ssub.s32 %s30, %s39
      %p183 = scmp.eq.s32.totalorder %s182, 0
      %s185 = sadd.s32 %s184, 1
      %s186 = scalar_select %p183, %s184, %s185
      %p189 = pneg %p183
      %p190 = scmp.eq.s32.totalorder %s21, 7
      %p191 = por %p189, %p190
      %p192 = scmp.ne.s32.totalorder %s184, %s187
      %p193 = scmp.eq.s32.totalorder %s21, 0
      %p194 = por %p192, %p193
      %p195 = scmp.ne.s32.totalorder %s184, %s187
      %p196 = scmp.eq.s32.totalorder %s26, 7
      %p197 = por %p195, %p196
      %p198 = scmp.ne.s32.totalorder %s187, %s188
      %p199 = scmp.eq.s32.totalorder %s26, 0
      %p200 = por %p198, %p199
      %p201 = scmp.ne.s32.totalorder %s187, %s188
      %p202 = scmp.eq.s32.totalorder %s27, 7
      %p203 = por %p201, %p202
      %p205 = scmp.ne.s32.totalorder %s188, %s204
      %p206 = scmp.eq.s32.totalorder %s27, 0
      %p207 = por %p205, %p206
      %s208 = ssub.s32 %s30, %s39
      %p209 = scmp.eq.s32.totalorder %s208, 0
      %s211 = sadd.s32 %s210, 1
      %s212 = scalar_select %p209, %s210, %s211
      %p215 = pneg %p209
      %p216 = scmp.eq.s32.totalorder %s21, 7
      %p217 = por %p215, %p216
      %p218 = scmp.ne.s32.totalorder %s210, %s213
      %p219 = scmp.eq.s32.totalorder %s21, 0
      %p220 = por %p218, %p219
      %p221 = scmp.ne.s32.totalorder %s210, %s213
      %p222 = scmp.eq.s32.totalorder %s26, 7
      %p223 = por %p221, %p222
      %p224 = scmp.ne.s32.totalorder %s213, %s214
      %p225 = scmp.eq.s32.totalorder %s26, 0
      %p226 = por %p224, %p225
      %p227 = scmp.ne.s32.totalorder %s213, %s214
      %p228 = scmp.eq.s32.totalorder %s27, 7
      %p229 = por %p227, %p228
      %p231 = scmp.ne.s32.totalorder %s214, %s230
      %p232 = scmp.eq.s32.totalorder %s27, 0
      %p233 = por %p231, %p232
      %s234 = ssub.s32 %s30, %s39
      %p235 = scmp.eq.s32.totalorder %s234, 0
      %s237 = sadd.s32 %s236, 1
      %s238 = scalar_select %p235, %s236, %s237
      %p241 = pneg %p235
      %p242 = scmp.eq.s32.totalorder %s21, 7
      %p243 = por %p241, %p242
      %p244 = scmp.ne.s32.totalorder %s236, %s239
      %p245 = scmp.eq.s32.totalorder %s21, 0
      %p246 = por %p244, %p245
      %p247 = scmp.ne.s32.totalorder %s236, %s239
      %p248 = scmp.eq.s32.totalorder %s26, 7
      %p249 = por %p247, %p248
      %p250 = scmp.ne.s32.totalorder %s239, %s240
      %p251 = scmp.eq.s32.totalorder %s26, 0
      %p252 = por %p250, %p251
      %p253 = scmp.ne.s32.totalorder %s239, %s240
      %p254 = scmp.eq.s32.totalorder %s27, 7
      %p255 = por %p253, %p254
      %p257 = scmp.ne.s32.totalorder %s240, %s256
      %p258 = scmp.eq.s32.totalorder %s27, 0
      %p259 = por %p257, %p258
      %s260 = ssub.s32 %s30, %s39
      %p261 = scmp.eq.s32.totalorder %s260, 0
      %s263 = sadd.s32 %s262, 1
      %s264 = scalar_select %p261, %s262, %s263
      %p267 = pneg %p261
      %p268 = scmp.eq.s32.totalorder %s21, 7
      %p269 = por %p267, %p268
      %p270 = scmp.ne.s32.totalorder %s262, %s265
      %p271 = scmp.eq.s32.totalorder %s21, 0
      %p272 = por %p270, %p271
      %p273 = scmp.ne.s32.totalorder %s262, %s265
      %p274 = scmp.eq.s32.totalorder %s26, 7
      %p275 = por %p273, %p274
      %p276 = scmp.ne.s32.totalorder %s265, %s266
      %p277 = scmp.eq.s32.totalorder %s26, 0
      %p278 = por %p276, %p277
      %p279 = scmp.ne.s32.totalorder %s265, %s266
      %p280 = scmp.eq.s32.totalorder %s27, 7
      %p281 = por %p279, %p280
      %p283 = scmp.ne.s32.totalorder %s266, %s282
      %p284 = scmp.eq.s32.totalorder %s27, 0
      %p285 = por %p283, %p284
      %s286 = ssub.s32 %s30, %s39
      %p287 = scmp.eq.s32.totalorder %s286, 0
      %s289 = sadd.s32 %s288, 1
      %s290 = scalar_select %p287, %s288, %s289
      %p293 = pneg %p287
      %p294 = scmp.eq.s32.totalorder %s21, 7
      %p295 = por %p293, %p294
      %p296 = scmp.ne.s32.totalorder %s288, %s291
      %p297 = scmp.eq.s32.totalorder %s21, 0
      %p298 = por %p296, %p297
      %p299 = scmp.ne.s32.totalorder %s288, %s291
      %p300 = scmp.eq.s32.totalorder %s26, 7
      %p301 = por %p299, %p300
      %p302 = scmp.ne.s32.totalorder %s291, %s292
      %p303 = scmp.eq.s32.totalorder %s26, 0
      %p304 = por %p302, %p303
      %p305 = scmp.ne.s32.totalorder %s291, %s292
      %p306 = scmp.eq.s32.totalorder %s27, 7
      %p307 = por %p305, %p306
      %p309 = scmp.ne.s32.totalorder %s292, %s308
      %p310 = scmp.eq.s32.totalorder %s27, 0
      %p311 = por %p309, %p310
      %s312 = ssub.s32 %s30, %s39
      %p313 = scmp.eq.s32.totalorder %s312, 0
      %s315 = sadd.s32 %s314, 1
      %s316 = scalar_select %p313, %s314, %s315
      %p319 = pneg %p313
      %p320 = scmp.eq.s32.totalorder %s21, 7
      %p321 = por %p319, %p320
      %p322 = scmp.ne.s32.totalorder %s314, %s317
      %p323 = scmp.eq.s32.totalorder %s21, 0
      %p324 = por %p322, %p323
      %p325 = scmp.ne.s32.totalorder %s314, %s317
      %p326 = scmp.eq.s32.totalorder %s26, 7
      %p327 = por %p325, %p326
      %p328 = scmp.ne.s32.totalorder %s317, %s318
      %p329 = scmp.eq.s32.totalorder %s26, 0
      %p330 = por %p328, %p329
      %p331 = scmp.ne.s32.totalorder %s317, %s318
      %p332 = scmp.eq.s32.totalorder %s27, 7
      %p333 = por %p331, %p332
      %p335 = scmp.ne.s32.totalorder %s318, %s334
      %p336 = scmp.eq.s32.totalorder %s27, 0
      %p337 = por %p335, %p336
      %s339 = sadd.s32 %s338, 1
      %p342 = scmp.eq.s32.totalorder %s21, 7
      %p343 = scmp.ne.s32.totalorder %s338, %s340
      %p344 = scmp.eq.s32.totalorder %s21, 0
      %p345 = por %p343, %p344
      %p346 = scmp.ne.s32.totalorder %s338, %s340
      %p347 = scmp.eq.s32.totalorder %s26, 7
      %p348 = por %p346, %p347
      %p349 = scmp.ne.s32.totalorder %s340, %s341
      %p350 = scmp.eq.s32.totalorder %s26, 0
      %p351 = por %p349, %p350
      %p352 = scmp.ne.s32.totalorder %s340, %s341
      %p353 = scmp.eq.s32.totalorder %s27, 7
      %p354 = por %p352, %p353
      %p356 = scmp.ne.s32.totalorder %s341, %s355
      %p357 = scmp.eq.s32.totalorder %s27, 0
      %p358 = por %p356, %p357
      %s359 = ssub.s32 %s28, %s47
      %s360 = ssub.s32 %s29, %s43
      %s361 = sor.u32 %s359, %s360
      %p362 = scmp.eq.s32.totalorder %s361, 0
      %s364 = sadd.s32 %s363, 1
      %s365 = scalar_select %p362, %s363, %s364
      %p368 = pneg %p362
      %p369 = scmp.eq.s32.totalorder %s21, 7
      %p370 = por %p368, %p369
      %p371 = scmp.ne.s32.totalorder %s363, %s366
      %p372 = scmp.eq.s32.totalorder %s21, 0
      %p373 = por %p371, %p372
      %p374 = scmp.ne.s32.totalorder %s363, %s366
      %p375 = scmp.eq.s32.totalorder %s26, 7
      %p376 = por %p374, %p375
      %p377 = scmp.ne.s32.totalorder %s366, %s367
      %p378 = scmp.eq.s32.totalorder %s26, 0
      %p379 = por %p377, %p378
      %p380 = scmp.ne.s32.totalorder %s366, %s367
      %p381 = scmp.eq.s32.totalorder %s27, 7
      %p382 = por %p380, %p381
      %p384 = scmp.ne.s32.totalorder %s367, %s383
      %p385 = scmp.eq.s32.totalorder %s27, 0
      %p386 = por %p384, %p385
      %p387 = scmp.le.s32.totalorder 1, %s21
      %p388 = scmp.lt.s32.totalorder %s21, 9
      %p389 = pnand %p387, %p388
      %p390 = pneg %p389
      // Predicated region
      $region9: #{tpu_custom_call.1} parent=5 // pred_check
        _
      $region10: #{tpu_custom_call.1} parent=5 // pred_check_branch
        %392 = sbr.rel (%p389) target = $region12
      $region11: #{tpu_custom_call.1} parent=5 // pred_region
        %s393 = ssub.s32 %s21, 1
        // Predicated region
        $region13: #{tpu_custom_call.1} parent=11 // pred_check
          %p394 = pneg %p351
        $region14: #{tpu_custom_call.1} parent=11 // pred_check_branch
          %396 = sbr.rel (%p394) target = $region16
        $region15: #{tpu_custom_call.1} parent=11 // pred_region
          _
        $region16: #{tpu_custom_call.1} parent=11 // pred_fallthru
          _
      $region12: #{tpu_custom_call.1} parent=5 // pred_fallthru
        _
      %p397 = scmp.lt.s32.totalorder %s21, 8
      // Predicated region
      $region17: #{tpu_custom_call.1} parent=5 // pred_check
        %p398 = pneg %p397
      $region18: #{tpu_custom_call.1} parent=5 // pred_check_branch
        %400 = sbr.rel (%p398) target = $region20
      $region19: #{tpu_custom_call.1} parent=5 // pred_region
        // Predicated region
        $region21: #{tpu_custom_call.1} parent=19 // pred_check
          %p401 = pneg %p62
        $region22: #{tpu_custom_call.1} parent=19 // pred_check_branch
          %403 = sbr.rel (%p401) target = $region24
        $region23: #{tpu_custom_call.1} parent=19 // pred_region
          %p404 = scmp.lt.s32.totalorder %s28, 1
          %s405 = scalar_select %p404, %s28, 1
          %p406 = scmp.lt.s32.totalorder %s29, 0
          %s407 = scalar_select %p406, %s29, 0
          %s408 = sadd.s32 %s407, %s405
          %s409 = smul.addr %s408, 8
          %s410 = scalar_lea.vmem %s0, %s409
        $region24: #{tpu_custom_call.1} parent=19 // pred_fallthru
          _
        // Predicated region
        $region25: #{tpu_custom_call.1} parent=19 // pred_check
          %p411 = pneg %p88
        $region26: #{tpu_custom_call.1} parent=19 // pred_check_branch
          %413 = sbr.rel (%p411) target = $region28
        $region27: #{tpu_custom_call.1} parent=19 // pred_region
          %p414 = scmp.lt.s32.totalorder %s28, 1
          %s415 = scalar_select %p414, %s28, 1
          %s416 = smul.addr %s415, 8
          %s417 = scalar_lea.vmem %s1, %s416
        $region28: #{tpu_custom_call.1} parent=19 // pred_fallthru
          _
        // Predicated region
        $region29: #{tpu_custom_call.1} parent=19 // pred_check
          %p418 = pneg %p114
        $region30: #{tpu_custom_call.1} parent=19 // pred_check_branch
          %420 = sbr.rel (%p418) target = $region32
        $region31: #{tpu_custom_call.1} parent=19 // pred_region
          %p421 = scmp.lt.s32.totalorder %s28, 1
          %s422 = scalar_select %p421, %s28, 1
          %s423 = smul.addr %s422, 8
          %s424 = scalar_lea.vmem %s2, %s423
        $region32: #{tpu_custom_call.1} parent=19 // pred_fallthru
          _
        // Predicated region
        $region33: #{tpu_custom_call.1} parent=19 // pred_check
          %p425 = pneg %p142
        $region34: #{tpu_custom_call.1} parent=19 // pred_check_branch
          %427 = sbr.rel (%p425) target = $region36
        $region35: #{tpu_custom_call.1} parent=19 // pred_region
          %p428 = scmp.lt.s32.totalorder %s28, 1
          %s429 = scalar_select %p428, %s28, 1
          %p430 = scmp.lt.s32.totalorder %s29, 0
          %s431 = scalar_select %p430, %s29, 0
          %s432 = sadd.s32 %s431, %s429
          %s433 = smul.addr %s432, 2
          %s434 = scalar_lea.vmem %s3, %s433
        $region36: #{tpu_custom_call.1} parent=19 // pred_fallthru
          _
        // Predicated region
        $region37: #{tpu_custom_call.1} parent=19 // pred_check
          %p435 = pneg %p168
        $region38: #{tpu_custom_call.1} parent=19 // pred_check_branch
          %437 = sbr.rel (%p435) target = $region40
        $region39: #{tpu_custom_call.1} parent=19 // pred_region
          %p438 = scmp.lt.s32.totalorder %s30, 3
          %s439 = scalar_select %p438, %s30, 3
          %s440 = smul.addr %s439, 4
          %s441 = smul.addr %s440, 8
          %s442 = scalar_lea.vmem %s4, %s441
        $region40: #{tpu_custom_call.1} parent=19 // pred_fallthru
          _
        // Predicated region
        $region41: #{tpu_custom_call.1} parent=19 // pred_check
          %p443 = pneg %p194
        $region42: #{tpu_custom_call.1} parent=19 // pred_check_branch
          %445 = sbr.rel (%p443) target = $region44
        $region43: #{tpu_custom_call.1} parent=19 // pred_region
          %p446 = scmp.lt.s32.totalorder %s30, 3
          %s447 = scalar_select %p446, %s30, 3
          %s448 = scalar_lea.vmem %s5, %s447
        $region44: #{tpu_custom_call.1} parent=19 // pred_fallthru
          _
        // Predicated region
        $region45: #{tpu_custom_call.1} parent=19 // pred_check
          %p449 = pneg %p220
        $region46: #{tpu_custom_call.1} parent=19 // pred_check_branch
          %451 = sbr.rel (%p449) target = $region48
        $region47: #{tpu_custom_call.1} parent=19 // pred_region
          %p452 = scmp.lt.s32.totalorder %s30, 3
          %s453 = scalar_select %p452, %s30, 3
          %s454 = smul.addr %s453, 4
          %s455 = smul.addr %s454, 8
          %s456 = scalar_lea.vmem %s6, %s455
        $region48: #{tpu_custom_call.1} parent=19 // pred_fallthru
          _
        // Predicated region
        $region49: #{tpu_custom_call.1} parent=19 // pred_check
          %p457 = pneg %p246
        $region50: #{tpu_custom_call.1} parent=19 // pred_check_branch
          %459 = sbr.rel (%p457) target = $region52
        $region51: #{tpu_custom_call.1} parent=19 // pred_region
          %p460 = scmp.lt.s32.totalorder %s30, 3
          %s461 = scalar_select %p460, %s30, 3
          %s462 = scalar_lea.vmem %s7, %s461
        $region52: #{tpu_custom_call.1} parent=19 // pred_fallthru
          _
        // Predicated region
        $region53: #{tpu_custom_call.1} parent=19 // pred_check
          %p463 = pneg %p272
        $region54: #{tpu_custom_call.1} parent=19 // pred_check_branch
          %465 = sbr.rel (%p463) target = $region56
        $region55: #{tpu_custom_call.1} parent=19 // pred_region
          %p466 = scmp.lt.s32.totalorder %s30, 3
          %s467 = scalar_select %p466, %s30, 3
          %s468 = smul.addr %s467, 4
          %s469 = smul.addr %s468, 8
          %s470 = scalar_lea.vmem %s8, %s469
        $region56: #{tpu_custom_call.1} parent=19 // pred_fallthru
          _
        // Predicated region
        $region57: #{tpu_custom_call.1} parent=19 // pred_check
          %p471 = pneg %p298
        $region58: #{tpu_custom_call.1} parent=19 // pred_check_branch
          %473 = sbr.rel (%p471) target = $region60
        $region59: #{tpu_custom_call.1} parent=19 // pred_region
          %p474 = scmp.lt.s32.totalorder %s30, 3
          %s475 = scalar_select %p474, %s30, 3
          %s476 = scalar_lea.vmem %s9, %s475
        $region60: #{tpu_custom_call.1} parent=19 // pred_fallthru
          _
        // Predicated region
        $region61: #{tpu_custom_call.1} parent=19 // pred_check
          %p477 = pneg %p324
        $region62: #{tpu_custom_call.1} parent=19 // pred_check_branch
          %479 = sbr.rel (%p477) target = $region64
        $region63: #{tpu_custom_call.1} parent=19 // pred_region
          %p480 = scmp.lt.s32.totalorder %s30, 3
          %s481 = scalar_select %p480, %s30, 3
          %s482 = smul.addr %s481, 8
          %s483 = scalar_lea.vmem %s10, %s482
        $region64: #{tpu_custom_call.1} parent=19 // pred_fallthru
          _
      $region20: #{tpu_custom_call.1} parent=5 // pred_fallthru
        _
      %p484 = scmp.le.s32.totalorder 1, %s21
      %p485 = scmp.lt.s32.totalorder %s21, 9
      %p486 = pnand %p484, %p485
      %p487 = pneg %p486
      // Predicated region
      $region65: #{tpu_custom_call.1} parent=5 // pred_check
        _
      $region66: #{tpu_custom_call.1} parent=5 // pred_check_branch
        %489 = sbr.rel (%p486) target = $region68
      $region67: #{tpu_custom_call.1} parent=5 // pred_region
        %s490 = ssub.s32 %s21, 1
        %p491 = scmp.lt.s32.totalorder %s31, 1
        %s492 = scalar_select %p491, %s31, 1
        %p493 = scmp.lt.s32.totalorder %s32, 0
        %s494 = scalar_select %p493, %s32, 0
        %s495 = sadd.s32 %s494, %s492
        %s496 = smul.addr %s495, 8
        %s497 = scalar_lea.vmem %s0, %s496
        %p498 = pneg %p68
        %p499 = pneg %p65
        %p500 = scmp.lt.s32.totalorder %s31, 1
        %s501 = scalar_select %p500, %s31, 1
        %s502 = smul.addr %s501, 8
        %s503 = scalar_lea.vmem %s1, %s502
        %p504 = pneg %p94
        %p505 = pneg %p91
        %p506 = scmp.lt.s32.totalorder %s31, 1
        %s507 = scalar_select %p506, %s31, 1
        %s508 = smul.addr %s507, 8
        %s509 = scalar_lea.vmem %s2, %s508
        %p510 = pneg %p120
        %p511 = pneg %p117
        %p512 = scmp.lt.s32.totalorder %s31, 1
        %s513 = scalar_select %p512, %s31, 1
        %p514 = scmp.lt.s32.totalorder %s32, 0
        %s515 = scalar_select %p514, %s32, 0
        %s516 = sadd.s32 %s515, %s513
        %s517 = smul.addr %s516, 2
        %s518 = scalar_lea.vmem %s3, %s517
        %p519 = pneg %p148
        %p520 = pneg %p145
        %p521 = scmp.lt.s32.totalorder %s33, 3
        %s522 = scalar_select %p521, %s33, 3
        %s523 = smul.addr %s522, 4
        %s524 = smul.addr %s523, 8
        %s525 = scalar_lea.vmem %s4, %s524
        %p526 = pneg %p174
        %p527 = pneg %p171
        %p528 = scmp.lt.s32.totalorder %s33, 3
        %s529 = scalar_select %p528, %s33, 3
        %s530 = scalar_lea.vmem %s5, %s529
        %p531 = pneg %p200
        %p532 = pneg %p197
        %p533 = scmp.lt.s32.totalorder %s33, 3
        %s534 = scalar_select %p533, %s33, 3
        %s535 = smul.addr %s534, 4
        %s536 = smul.addr %s535, 8
        %s537 = scalar_lea.vmem %s6, %s536
        %p538 = pneg %p226
        %p539 = pneg %p223
        %p540 = scmp.lt.s32.totalorder %s33, 3
        %s541 = scalar_select %p540, %s33, 3
        %s542 = scalar_lea.vmem %s7, %s541
        %p543 = pneg %p252
        %p544 = pneg %p249
        %p545 = scmp.lt.s32.totalorder %s33, 3
        %s546 = scalar_select %p545, %s33, 3
        %s547 = smul.addr %s546, 4
        %s548 = smul.addr %s547, 8
        %s549 = scalar_lea.vmem %s8, %s548
        %p550 = pneg %p278
        %p551 = pneg %p275
        %p552 = scmp.lt.s32.totalorder %s33, 3
        %s553 = scalar_select %p552, %s33, 3
        %s554 = scalar_lea.vmem %s9, %s553
        %p555 = pneg %p304
        %p556 = pneg %p301
        %p557 = scmp.lt.s32.totalorder %s33, 3
        %s558 = scalar_select %p557, %s33, 3
        %s559 = smul.addr %s558, 8
        %s560 = scalar_lea.vmem %s10, %s559
        %p561 = pneg %p330
        %p562 = pneg %p327
        %p563 = pneg %p351
        %p564 = pneg %p348
        %p565 = pneg %p379
        %p566 = pneg %p376
        %s567 = sand.u32 %s366, 1
        %s568 = scalar_lea.sflag [#allocation4], %s567
        %s569 = sand.u32 %s366, 1
        %s570 = smul.addr %s569, 8
        %s571 = scalar_lea.vmem [#allocation3], %s570
        %p572 = scmp.lt.s32.totalorder %s31, 1
        %s573 = scalar_select %p572, %s31, 1
        %p574 = scmp.lt.s32.totalorder %s32, 0
        %s575 = scalar_select %p574, %s32, 0
        %s576 = sadd.s32 %s575, %s573
        %s577 = smul.addr %s576, 8
        %s578 = scalar_lea.vmem %s0, %s577
        %p579 = scmp.lt.s32.totalorder %s31, 1
        %s580 = scalar_select %p579, %s31, 1
        %s581 = smul.addr %s580, 8
        %s582 = scalar_lea.vmem %s1, %s581
        %p583 = scmp.lt.s32.totalorder %s31, 1
        %s584 = scalar_select %p583, %s31, 1
        %s585 = smul.addr %s584, 8
        %s586 = scalar_lea.vmem %s2, %s585
        %p587 = scmp.lt.s32.totalorder %s31, 1
        %s588 = scalar_select %p587, %s31, 1
        %p589 = scmp.lt.s32.totalorder %s32, 0
        %s590 = scalar_select %p589, %s32, 0
        %s591 = sadd.s32 %s590, %s588
        %s592 = smul.addr %s591, 2
        %s593 = scalar_lea.vmem %s3, %s592
        %p594 = scmp.lt.s32.totalorder %s33, 3
        %s595 = scalar_select %p594, %s33, 3
        %s596 = smul.addr %s595, 4
        %s597 = smul.addr %s596, 8
        %s598 = scalar_lea.vmem %s4, %s597
        %p599 = scmp.lt.s32.totalorder %s33, 3
        %s600 = scalar_select %p599, %s33, 3
        %s601 = scalar_lea.vmem %s5, %s600
        %p602 = scmp.lt.s32.totalorder %s33, 3
        %s603 = scalar_select %p602, %s33, 3
        %s604 = smul.addr %s603, 4
        %s605 = smul.addr %s604, 8
        %s606 = scalar_lea.vmem %s6, %s605
        %p607 = scmp.lt.s32.totalorder %s33, 3
        %s608 = scalar_select %p607, %s33, 3
        %s609 = scalar_lea.vmem %s7, %s608
        %p610 = scmp.lt.s32.totalorder %s33, 3
        %s611 = scalar_select %p610, %s33, 3
        %s612 = smul.addr %s611, 4
        %s613 = smul.addr %s612, 8
        %s614 = scalar_lea.vmem %s8, %s613
        %p615 = scmp.lt.s32.totalorder %s33, 3
        %s616 = scalar_select %p615, %s33, 3
        %s617 = scalar_lea.vmem %s9, %s616
        %p618 = scmp.lt.s32.totalorder %s33, 3
        %s619 = scalar_select %p618, %s33, 3
        %s620 = smul.addr %s619, 8
        %s621 = scalar_lea.vmem %s10, %s620
        %p624 = scmp.eq.s32.totalorder %s33, 0
        // Predicated region
        $region69: #{tpu_custom_call.1} parent=67 // pred_check
          %p625 = pneg %p624
        $region70: #{tpu_custom_call.1} parent=67 // pred_check_branch
          %627 = sbr.rel (%p625) target = $region72
        $region71: #{tpu_custom_call.1} parent=67 // pred_region
          %vm628 = vcmask 261120
          %629 = vst.msk [vmem:[#allocation2] sm:$0xff] %vm628, 0.0
        $region72: #{tpu_custom_call.1} parent=67 // pred_fallthru
          _
        %v630 = vld [vmem:[%s578] sm:$0xff]
        %v631 = vld [vmem:[%s582] sm:$0xff]
        %v632 = vld [vmem:[%s586] sm:$0xff]
        %v633 = vld [vmem:[%s598] sm:$0xff]
        %v634 = vld [vmem:[%s598 + $0x8] sm:$0xff]
        %v635 = vld [vmem:[%s598 + $0x10] sm:$0xff]
        %v636 = vld [vmem:[%s598 + $0x18] sm:$0xff]
        %v637 = vld [vmem:[%s601] sm:$0x1]
        %v639 = vperm.slane %v637, 0
        %vm641 = vcmask 261120
        %v643 = vsel %vm641, %v630, 0
        %645 = vmatpush.msra.mxu0 0.0
        %646 = vmatpush.msra.mxu0 0.0
        %647 = vmatpush.msra.mxu0 0.0
        %648 = vmatpush.msra.mxu0 0.0
        %649 = vmatpush.msra.mxu0 0.0
        %650 = vmatpush.msra.mxu0 0.0
        %651 = vmatpush.msra.mxu0 0.0
        %652 = vmatpush.msra.mxu0 0.0
        %653 = vmatpush.msra.mxu0 0.0
        %654 = vmatpush.msra.mxu0 0.0
        %655 = vmatpush.msra.mxu0 0.0
        %656 = vmatpush.msra.mxu0 0.0
        %657 = vmatpush.msra.mxu0 %v636
        %658 = vmatpush.msra.mxu0 %v635
        %659 = vmatpush.msra.mxu0 %v634
        %660 = vmatpush.msra.mxu0 %v633
        %661 = vmatmul.f32.gmra.mxu0 %v643
        %v662 = vpop.f32.mrf.mxu0
        %v663 = vadd.f32 %v639, %v662
        %664 = vdwg.mxu0
        %v665 = vmul.f32 %v663, 0.35355338
        %v666 = vld [vmem:[%s606] sm:$0xff]
        %v667 = vld [vmem:[%s606 + $0x8] sm:$0xff]
        %v668 = vld [vmem:[%s606 + $0x10] sm:$0xff]
        %v669 = vld [vmem:[%s606 + $0x18] sm:$0xff]
        %v670 = vld [vmem:[%s609] sm:$0x1]
        %v672 = vperm.slane %v670, 0
        %v675 = vsel %vm641, %v631, 0
        %677 = vmatpush.msra.mxu0 0.0
        %678 = vmatpush.msra.mxu0 0.0
        %679 = vmatpush.msra.mxu0 0.0
        %680 = vmatpush.msra.mxu0 0.0
        %681 = vmatpush.msra.mxu0 0.0
        %682 = vmatpush.msra.mxu0 0.0
        %683 = vmatpush.msra.mxu0 0.0
        %684 = vmatpush.msra.mxu0 0.0
        %685 = vmatpush.msra.mxu0 0.0
        %686 = vmatpush.msra.mxu0 0.0
        %687 = vmatpush.msra.mxu0 0.0
        %688 = vmatpush.msra.mxu0 0.0
        %689 = vmatpush.msra.mxu0 %v669
        %690 = vmatpush.msra.mxu0 %v668
        %691 = vmatpush.msra.mxu0 %v667
        %692 = vmatpush.msra.mxu0 %v666
        %693 = vmatmul.f32.gmra.mxu0 %v675
        %v694 = vpop.f32.mrf.mxu0
        %v695 = vadd.f32 %v672, %v694
        %696 = vdwg.mxu0
        %v697 = vld [vmem:[%s614] sm:$0xff]
        %v698 = vld [vmem:[%s614 + $0x8] sm:$0xff]
        %v699 = vld [vmem:[%s614 + $0x10] sm:$0xff]
        %v700 = vld [vmem:[%s614 + $0x18] sm:$0xff]
        %v701 = vld [vmem:[%s617] sm:$0x1]
        %v703 = vperm.slane %v701, 0
        %v706 = vsel %vm641, %v632, 0
        %708 = vmatpush.msra.mxu0 0.0
        %709 = vmatpush.msra.mxu0 0.0
        %710 = vmatpush.msra.mxu0 0.0
        %711 = vmatpush.msra.mxu0 0.0
        %712 = vmatpush.msra.mxu0 0.0
        %713 = vmatpush.msra.mxu0 0.0
        %714 = vmatpush.msra.mxu0 0.0
        %715 = vmatpush.msra.mxu0 0.0
        %716 = vmatpush.msra.mxu0 0.0
        %717 = vmatpush.msra.mxu0 0.0
        %718 = vmatpush.msra.mxu0 0.0
        %719 = vmatpush.msra.mxu0 0.0
        %720 = vmatpush.msra.mxu0 %v700
        %721 = vmatpush.msra.mxu0 %v699
        %722 = vmatpush.msra.mxu0 %v698
        %723 = vmatpush.msra.mxu0 %v697
        %724 = vmatmul.f32.gmra.mxu0 %v706
        %v725 = vpop.f32.mrf.mxu0
        %v726 = vadd.f32 %v703, %v725
        %727 = vdwg.mxu0
        %vm728 = vcmask 64512
        %v730 = vsel %vm728, %v665, 0
        %v733 = vsel %vm728, %v695, 0
        %735 = vmatpush.xpose.msra.mxu0 0.0
        %736 = vmatpush.xpose.msra.mxu0 0.0
        %737 = vmatpush.xpose.msra.mxu0 0.0
        %738 = vmatpush.xpose.msra.mxu0 0.0
        %739 = vmatpush.xpose.msra.mxu0 0.0
        %740 = vmatpush.xpose.msra.mxu0 0.0
        %741 = vmatpush.xpose.msra.mxu0 0.0
        %742 = vmatpush.xpose.msra.mxu0 0.0
        %743 = vmatpush.xpose.msra.mxu0 0.0
        %744 = vmatpush.xpose.msra.mxu0 0.0
        %745 = vmatpush.xpose.msra.mxu0 0.0
        %746 = vmatpush.xpose.msra.mxu0 0.0
        %747 = vmatpush.xpose.msra.mxu0 0.0
        %748 = vmatpush.xpose.msra.mxu0 0.0
        %749 = vmatpush.xpose.msra.mxu0 0.0
        %750 = vmatpush.xpose.msra.mxu0 %v733
        %751 = vmatmul.f32.gmra.mxu0 %v730
        %v752 = vpop.f32.mrf.mxu0
        %v753 = vadd.f32 0.0, %v752
        %754 = vdwg.mxu0
        %v755 = vld [vmem:[%s593] sm:$0x3]
        %vm756 = vnez %v755
        %v757 = vsel %vm756, 16843009, 0
        %v758 = vunpack.c.0.s8 %v757
        %vm759 = vcmp.ne.s32.totalorder %v758, 0
        %v760 = vsel %vm759, %v753, -1e+09
        %v761 = vsel %vm728, %v760, -inf
        %762 = vmax.xlane.f32.xlu0 %v761
        %v763 = vpop.xlane.xlu0 %762
        %v764 = vsub.f32 %v760, %v763
        %v765 = vmul.f32 %v764, 1.442695
        %v766 = vpow.pop %v765
        %v767 = vsel %vm728, %v766, 0.0
        %768 = vadd.xlane.f32.xlu0 %v767
        %v769 = vpop.xlane.xlu0 %768
        %v770 = vrcp.pop %v769
        %v772 = vsel %vm728, %v766, 0
        %774 = vmatpush.msra.mxu0 0.0
        %775 = vmatpush.msra.mxu0 0.0
        %776 = vmatpush.msra.mxu0 0.0
        %777 = vmatpush.msra.mxu0 0.0
        %778 = vmatpush.msra.mxu0 0.0
        %779 = vmatpush.msra.mxu0 0.0
        %780 = vmatpush.msra.mxu0 0.0
        %781 = vmatpush.msra.mxu0 0.0
        %782 = vmatpush.msra.mxu0 0.0
        %783 = vmatpush.msra.mxu0 0.0
        %784 = vmatpush.msra.mxu0 0.0
        %785 = vmatpush.msra.mxu0 0.0
        %786 = vmatpush.msra.mxu0 0.0
        %787 = vmatpush.msra.mxu0 0.0
        %788 = vmatpush.msra.mxu0 0.0
        %789 = vmatpush.msra.mxu0 %v726
        %790 = vmatmul.f32.gmra.mxu0 %v772
        %v791 = vpop.f32.mrf.mxu0
        %v792 = vadd.f32 0.0, %v791
        %793 = vdwg.mxu0
        %v794 = vmul.f32 %v792, %v770
        %v795 = vld [vmem:[#allocation2] sm:$0xff]
        %v796 = vld [vmem:[%s621] sm:$0xff]
        %v798 = vsel %vm728, %v794, 0
        %800 = vmatpush.msra.mxu0 0.0
        %801 = vmatpush.msra.mxu0 0.0
        %802 = vmatpush.msra.mxu0 0.0
        %803 = vmatpush.msra.mxu0 0.0
        %804 = vmatpush.msra.mxu0 0.0
        %805 = vmatpush.msra.mxu0 0.0
        %806 = vmatpush.msra.mxu0 0.0
        %807 = vmatpush.msra.mxu0 0.0
        %808 = vmatpush.msra.mxu0 0.0
        %809 = vmatpush.msra.mxu0 0.0
        %810 = vmatpush.msra.mxu0 0.0
        %811 = vmatpush.msra.mxu0 0.0
        %812 = vmatpush.msra.mxu0 0.0
        %813 = vmatpush.msra.mxu0 0.0
        %814 = vmatpush.msra.mxu0 0.0
        %815 = vmatpush.msra.mxu0 %v796
        %816 = vmatmul.f32.gmra.mxu0 %v798
        %v817 = vpop.f32.mrf.mxu0
        %v818 = vadd.f32 0.0, %v817
        %819 = vdwg.mxu0
        %v820 = vadd.f32 %v795, %v818
        %821 = vst.msk [vmem:[#allocation2] sm:$0xff] %vm641, %v820
        %p822 = scmp.eq.s32.totalorder %s33, 3
        // Predicated region
        $region73: #{tpu_custom_call.1} parent=67 // pred_check
          %p823 = pneg %p822
        $region74: #{tpu_custom_call.1} parent=67 // pred_check_branch
          %825 = sbr.rel (%p823) target = $region76
        $region75: #{tpu_custom_call.1} parent=67 // pred_region
          %v826 = vld [vmem:[#allocation2] sm:$0xff]
          %v827 = vld [vmem:[%s11] sm:$0x1]
          %v829 = vperm.slane %v827, 0
          %v831 = vadd.f32 %v826, %v829
          %832 = vst.msk [vmem:[%s571] sm:$0xff] %vm641, %v831
        $region76: #{tpu_custom_call.1} parent=67 // pred_fallthru
          _
        %s833 = sand.u32 %s366, 1
        %s834 = scalar_lea.sflag [#allocation4], %s833
        %s835 = sand.u32 %s366, 1
        %s836 = smul.addr %s835, 8
        %s837 = scalar_lea.vmem [#allocation3], %s836
        // Predicated region
        $region77: #{tpu_custom_call.1} parent=67 // pred_check
          %p838 = pneg %p376
        $region78: #{tpu_custom_call.1} parent=67 // pred_check_branch
          %840 = sbr.rel (%p838) target = $region80
        $region79: #{tpu_custom_call.1} parent=67 // pred_region
          %842 = vsyncadd %s834, 0
          %s843 = sadd.s32 %s32, %s31
          %s844 = smul.addr %s843, 8
          %s845 = scalar_lea.hbm %s12, %s844
          %s847 = sshll.u32 %s837, 4
          %s848 = int_to_ptr.vmem [resolvable:$true] %s847
          %s849 = sshll.u32 %s845, 4
          %s850 = int_to_ptr.hbm [resolvable:$true] %s849
          %852 = dma.vmem_to_hbm [thread:$0]  %s848, 128, %s850, %s834
        $region80: #{tpu_custom_call.1} parent=67 // pred_fallthru
          _
      $region68: #{tpu_custom_call.1} parent=5 // pred_fallthru
        _
      %p853 = scmp.le.s32.totalorder 2, %s21
      // Predicated region
      $region81: #{tpu_custom_call.1} parent=5 // pred_check
        %p854 = pneg %p853
      $region82: #{tpu_custom_call.1} parent=5 // pred_check_branch
        %856 = sbr.rel (%p854) target = $region84
      $region83: #{tpu_custom_call.1} parent=5 // pred_region
        %s857 = ssub.s32 %s21, 2
        // Predicated region
        $region85: #{tpu_custom_call.1} parent=83 // pred_check
          %p858 = pneg %p382
        $region86: #{tpu_custom_call.1} parent=83 // pred_check_branch
          %860 = sbr.rel (%p858) target = $region88
        $region87: #{tpu_custom_call.1} parent=83 // pred_region
          %s861 = sand.u32 %s367, 1
          %s862 = scalar_lea.sflag [#allocation4], %s861
          %s863 = sand.u32 %s367, 1
          %s864 = smul.addr %s863, 8
          %s865 = scalar_lea.vmem [#allocation3], %s864
          %867 = dma.done %s862, 128
        $region88: #{tpu_custom_call.1} parent=83 // pred_fallthru
          _
      $region84: #{tpu_custom_call.1} parent=5 // pred_fallthru
        _
    $region6: #{tpu_custom_call.1} parent=1 // loop_footer
      %s25 = sadd.s32 1, %s21
    $region7: #{tpu_custom_call.1} parent=1 // loop_footer_branch
      %20 = sbr.rel target = $region3
    $region8: #{tpu_custom_call.1} parent=1 // loop_exit
      _
    %868 = vsyncpa [#allocation4], 1
    %s869 = scalar_lea.sflag [#allocation4], 1
    %870 = vsyncpa %s869, 1

</llo_original>
